<compile_context>
chip_gen: v7x
topology: tpu7x:2x2x1
jax: 0.10.0
libtpu: 0.0.40
codegen_flags: <defaults>
</compile_context>

<pallas_src>
import math
import functools

import jax
import jax.numpy as jnp
from jax.experimental import pallas as pl
from jax.experimental.pallas import tpu as pltpu


def graphconv_kernel(adj_ref, h_ref, w_ref, in_norm_ref, bias_ref, o_ref,
                     acc_ref):
    """One (row-tile, k-tile) grid step.

    adj_ref : (tile_n, tile_k) bf16   adjacency tile [dst, src]
    h_ref   : (tile_k, Dp)     bf16   left-normalized source features
    w_ref   : (Dp, Dp)         f32    weight (resident, constant index map)
    in_norm : (tile_n, 1)      f32    in-degree^-1/2 for this row tile
    bias    : (1, Dp)          f32
    o_ref   : (tile_n, Dp)     f32    output tile (written on last k step)
    acc_ref : (tile_n, Dp)     f32    aggregation accumulator (scratch)
    """
    k = pl.program_id(1)

    @pl.when(k == 0)
    def _init():
        acc_ref[...] = jnp.zeros_like(acc_ref)

    # message passing partial sum over this block of source nodes (MXU, bf16
    # operands, f32 accumulate).
    acc_ref[...] += jnp.dot(adj_ref[...], h_ref[...],
                            preferred_element_type=jnp.float32)

    @pl.when(k == pl.num_programs(1) - 1)
    def _finalize():
        # linear transform, right normalization, bias (all f32).
        rst = jnp.dot(acc_ref[...], w_ref[...],
                      preferred_element_type=jnp.float32)
        o_ref[...] = (rst * in_norm_ref[...] + bias_ref[...]).astype(o_ref.dtype)


@functools.partial(jax.jit, static_argnames=("tile_n", "tile_k"))
def graph_conv(adj, feat, weight, bias, *, tile_n=None, tile_k=None):
    N, D = feat.shape
    assert adj.shape == (N, N)
    assert weight.shape == (D, D)
    assert bias.shape == (D,)

    if tile_n is None:
        # keep >= 2 row tiles when possible so both v7x TensorCores get work.
        tile_n = N // 2 if (N >= 16 and N % 16 == 0) else N
    if tile_k is None:
        # single K step for small graphs; for large N pick a multiple of 128.
        tile_k = N
    assert N % tile_n == 0 and N % tile_k == 0

    # lane-dense feature dimension (multiple of 128).
    Dp = ((D + 127) // 128) * 128
    pad = Dp - D

    # ---- graph-side glue (degree norms), done once in the wrapper ----------
    out_deg = jnp.maximum(jnp.sum(adj, axis=0), 1.0)      # per source node
    in_deg = jnp.maximum(jnp.sum(adj, axis=1), 1.0)       # per destination node
    out_norm = (out_deg ** -0.5)[:, None].astype(jnp.float32)
    in_norm = (in_deg ** -0.5)[:, None].astype(jnp.float32)

    # Hoisted grid-invariant work: left-normalize feat once, pad to Dp lanes,
    # and cast the two MXU operands to bf16 (adj is exactly 0/1 -> lossless).
    h = feat.astype(jnp.float32) * out_norm
    h = jnp.pad(h, ((0, 0), (0, pad))).astype(jnp.bfloat16)
    adj_bf16 = adj.astype(jnp.bfloat16)
    w_p = jnp.pad(weight.astype(jnp.float32), ((0, pad), (0, pad)))
    bias_p = jnp.pad(bias.astype(jnp.float32), (0, pad))[None, :]

    flops = 2 * N * N * Dp + 2 * N * Dp * Dp
    bytes_accessed = (adj_bf16.size * 2 + h.size * 2 + w_p.size * 4
                      + N * Dp * 4 + in_norm.size * 4 + bias_p.size * 4)
    cost = pl.CostEstimate(flops=flops, transcendentals=0,
                           bytes_accessed=bytes_accessed)

    out_p = pl.pallas_call(
        graphconv_kernel,
        out_shape=jax.ShapeDtypeStruct((N, Dp), jnp.float32),
        grid=(N // tile_n, N // tile_k),
        in_specs=[
            pl.BlockSpec((tile_n, tile_k), lambda i, k: (i, k)),  # adj tile
            pl.BlockSpec((tile_k, Dp), lambda i, k: (k, 0)),      # normed feat
            pl.BlockSpec((Dp, Dp), lambda i, k: (0, 0)),          # weight
            pl.BlockSpec((tile_n, 1), lambda i, k: (i, 0)),       # in-deg norm
            pl.BlockSpec((1, Dp), lambda i, k: (0, 0)),           # bias
        ],
        out_specs=pl.BlockSpec((tile_n, Dp), lambda i, k: (i, 0)),
        scratch_shapes=[pltpu.VMEM((tile_n, Dp), jnp.float32)],
        compiler_params=pltpu.CompilerParams(
            dimension_semantics=("parallel", "arbitrary")),
        cost_estimate=cost,
    )(adj_bf16, h, w_p, in_norm, bias_p)

    return out_p[:, :D]


def xinitialization(key, mean_A, var_A, var_F, n, d):
    # mirrors GraphConv.xinitialization: weight ~ Normal(0, std), shape (d, d)
    std_list = [math.sqrt(2.0 * i / (d * n * var_A * i + d * mean_A ** 2))
                for i in var_F]
    std = float(sum(std_list) / len(std_list))
    return std * jax.random.normal(key, (d, d), dtype=jnp.float32)


def reference(adj, feat, weight, bias):
    # pure-f32 reference of the module forward (norm='both').
    out_deg = jnp.maximum(jnp.sum(adj, axis=0), 1.0)
    in_deg = jnp.maximum(jnp.sum(adj, axis=1), 1.0)
    h = feat * (out_deg ** -0.5)[:, None]
    agg = jnp.dot(adj, h, precision=jax.lax.Precision.HIGHEST)
    rst = jnp.dot(agg, weight, precision=jax.lax.Precision.HIGHEST)
    rst = rst * (in_deg ** -0.5)[:, None]
    return rst + bias[None, :]


if __name__ == "__main__":
    N = 64          # num_of_nodes
    D = 32          # in_feats == out_feats
    TILE_N = 32     # 2 row tiles -> both v7x TensorCores busy
    TILE_K = 64     # = N: single reduction step for this small graph

    key = jax.random.PRNGKey(0)
    k_feat, k_edges, k_w = jax.random.split(key, 3)

    # node features [N, D]
    feat = jax.random.normal(k_feat, (N, D), dtype=jnp.float32)

    # random dense adjacency [dst, src] with self-loops (no 0-in-degree nodes)
    adj = (jax.random.uniform(k_edges, (N, N)) < 0.1).astype(jnp.float32)
    adj = jnp.maximum(adj, jnp.eye(N, dtype=jnp.float32))

    # deterministic parameter init matching the module's reset_parameters()
    mean_A, var_A, var_F = 0.1, 0.05, [1.0, 2.0, 0.5]
    weight = xinitialization(k_w, mean_A, var_A, var_F, N, D)
    bias = jnp.zeros((D,), dtype=jnp.float32)       # init.zeros_

    # TODO(synk): dropout (p=0) and activation (None) are identity in this
    # configuration and therefore not implemented in the kernel.

    out = graph_conv(adj, feat, weight, bias, tile_n=TILE_N, tile_k=TILE_K)
    out = jax.block_until_ready(out)

    ref = reference(adj, feat, weight, bias)
    assert out.shape == (N, D)
    # bf16 MXU operands (adj exact, features rounded) -> ~1e-3-level deviation
    # from the pure-f32 reference; 2e-2 leaves >10x margin.
    assert jnp.allclose(out, ref, atol=2e-2, rtol=2e-2), \
        float(jnp.max(jnp.abs(out - ref)))

    print("KERNEL_OK")
</pallas_src>

<mosaic_0001>
module attributes {stable_mosaic.version = 11 : i64} {
  func.func @graphconv_kernel(%arg0: i32, %arg1: i32, %arg2: memref<32x64xbf16, #tpu.memory_space<vmem>>, %arg3: memref<64x128xbf16, #tpu.memory_space<vmem>>, %arg4: memref<128x128xf32, #tpu.memory_space<vmem>>, %arg5: memref<32x1xf32, #tpu.memory_space<vmem>>, %arg6: memref<1x128xf32, #tpu.memory_space<vmem>>, %arg7: memref<32x128xf32, #tpu.memory_space<vmem>>, %arg8: memref<32x128xf32, #tpu.memory_space<vmem>>) attributes {dimension_semantics = [#tpu.dimension_semantics<parallel>, #tpu.dimension_semantics<arbitrary>], iteration_bounds = array<i64: 2, 1>, scalar_prefetch = 0 : i64, scratch_operands = 1 : i64, tpu.core_type = #tpu.core_type<tc>, window_params = [{transform_indices = @transform_0, window_bounds = array<i64: 32, 64>}, {transform_indices = @transform_1, window_bounds = array<i64: 64, 128>}, {pipeline_mode = #tpu.pipeline_mode<synchronous>, transform_indices = @transform_2, window_bounds = array<i64: 128, 128>}, {transform_indices = @transform_3, window_bounds = array<i64: 32, 1>}, {pipeline_mode = #tpu.pipeline_mode<synchronous>, transform_indices = @transform_4, window_bounds = array<i64: 1, 128>}, {transform_indices = @transform_5, window_bounds = array<i64: 32, 128>}]} {
    %c0_i32 = arith.constant 0 : i32
    %0 = arith.cmpi eq, %arg1, %c0_i32 : i32
    %1 = arith.extui %0 : i1 to i32
    %c0_i32_0 = arith.constant 0 : i32
    %2 = arith.cmpi ne, %1, %c0_i32_0 : i32
    scf.if %2 {
      %cst_10 = arith.constant 0.000000e+00 : f32
      %12 = vector.broadcast %cst_10 : f32 to vector<32x128xf32>
      %c0_11 = arith.constant 0 : index
      %c0_12 = arith.constant 0 : index
      %13 = vector.load %arg8[%c0_11, %c0_12] : memref<32x128xf32, #tpu.memory_space<vmem>>, vector<32x128xf32>
      tpu.vector_store %arg8[%c0_11, %c0_12], %12 {strides = array<i32>} : memref<32x128xf32, #tpu.memory_space<vmem>>, vector<32x128xf32>,
    } else {
    }
    %c0 = arith.constant 0 : index
    %c0_1 = arith.constant 0 : index
    %3 = vector.load %arg8[%c0, %c0_1] : memref<32x128xf32, #tpu.memory_space<vmem>>, vector<32x128xf32>
    %c0_2 = arith.constant 0 : index
    %c0_3 = arith.constant 0 : index
    %4 = vector.load %arg2[%c0_2, %c0_3] : memref<32x64xbf16, #tpu.memory_space<vmem>>, vector<32x64xbf16>
    %c0_4 = arith.constant 0 : index
    %c0_5 = arith.constant 0 : index
    %5 = vector.load %arg3[%c0_4, %c0_5] : memref<64x128xbf16, #tpu.memory_space<vmem>>, vector<64x128xbf16>
    %cst = arith.constant dense<0.000000e+00> : vector<32x128xf32>
    %6 = tpu.matmul %4, %5, %cst {dimension_numbers = #tpu.dot_dimension_numbers<[1], [0], [0], [1], [0, 0, 1, 1], [], []>} : vector<32x64xbf16>, vector<64x128xbf16>, vector<32x128xf32> -> vector<32x128xf32>
    %7 = arith.addf %3, %6 : vector<32x128xf32>
    %c0_6 = arith.constant 0 : index
    %c0_7 = arith.constant 0 : index
    %8 = vector.load %arg8[%c0_6, %c0_7] : memref<32x128xf32, #tpu.memory_space<vmem>>, vector<32x128xf32>
    tpu.vector_store %arg8[%c0_6, %c0_7], %7 {strides = array<i32>} : memref<32x128xf32, #tpu.memory_space<vmem>>, vector<32x128xf32>,
    %c0_i32_8 = arith.constant 0 : i32
    %9 = arith.cmpi eq, %arg1, %c0_i32_8 : i32
    %10 = arith.extui %9 : i1 to i32
    %c0_i32_9 = arith.constant 0 : i32
    %11 = arith.cmpi ne, %10, %c0_i32_9 : i32
    scf.if %11 {
      %c0_10 = arith.constant 0 : index
      %c0_11 = arith.constant 0 : index
      %12 = vector.load %arg8[%c0_10, %c0_11] : memref<32x128xf32, #tpu.memory_space<vmem>>, vector<32x128xf32>
      %c0_12 = arith.constant 0 : index
      %c0_13 = arith.constant 0 : index
      %13 = vector.load %arg4[%c0_12, %c0_13] : memref<128x128xf32, #tpu.memory_space<vmem>>, vector<128x128xf32>
      %cst_14 = arith.constant dense<0.000000e+00> : vector<32x128xf32>
      %14 = tpu.matmul %12, %13, %cst_14 {dimension_numbers = #tpu.dot_dimension_numbers<[1], [0], [0], [1], [0, 0, 1, 1], [], []>} : vector<32x128xf32>, vector<128x128xf32>, vector<32x128xf32> -> vector<32x128xf32>
      %c0_15 = arith.constant 0 : index
      %c0_16 = arith.constant 0 : index
      %15 = vector.load %arg5[%c0_15, %c0_16] : memref<32x1xf32, #tpu.memory_space<vmem>>, vector<32x1xf32>
      %16 = vector.broadcast %15 : vector<32x1xf32> to vector<32x128xf32>
      %17 = arith.mulf %14, %16 : vector<32x128xf32>
      %c0_17 = arith.constant 0 : index
      %c0_18 = arith.constant 0 : index
      %18 = vector.load %arg6[%c0_17, %c0_18] : memref<1x128xf32, #tpu.memory_space<vmem>>, vector<1x128xf32>
      %19 = vector.broadcast %18 : vector<1x128xf32> to vector<32x128xf32>
      %20 = arith.addf %17, %19 : vector<32x128xf32>
      %c0_19 = arith.constant 0 : index
      %c0_20 = arith.constant 0 : index
      %21 = vector.load %arg7[%c0_19, %c0_20] : memref<32x128xf32, #tpu.memory_space<vmem>>, vector<32x128xf32>
      tpu.vector_store %arg7[%c0_19, %c0_20], %20 {strides = array<i32>} : memref<32x128xf32, #tpu.memory_space<vmem>>, vector<32x128xf32>,
    } else {
    }
    return
  }
  func.func @transform_0(%arg0: i32, %arg1: i32) -> (i32, i32) {
    %c0_i32 = arith.constant 0 : i32
    return %arg0, %arg1 : i32, i32
  }
  func.func @transform_1(%arg0: i32, %arg1: i32) -> (i32, i32) {
    %c0_i32 = arith.constant 0 : i32
    %c0_i32_0 = arith.constant 0 : i32
    return %arg1, %c0_i32 : i32, i32
  }
  func.func @transform_2(%arg0: i32, %arg1: i32) -> (i32, i32) {
    %c0_i32 = arith.constant 0 : i32
    %c0_i32_0 = arith.constant 0 : i32
    %c0_i32_1 = arith.constant 0 : i32
    return %c0_i32, %c0_i32_0 : i32, i32
  }
  func.func @transform_3(%arg0: i32, %arg1: i32) -> (i32, i32) {
    %c0_i32 = arith.constant 0 : i32
    %c0_i32_0 = arith.constant 0 : i32
    return %arg0, %c0_i32 : i32, i32
  }
  func.func @transform_4(%arg0: i32, %arg1: i32) -> (i32, i32) {
    %c0_i32 = arith.constant 0 : i32
    %c0_i32_0 = arith.constant 0 : i32
    %c0_i32_1 = arith.constant 0 : i32
    return %c0_i32, %c0_i32_0 : i32, i32
  }
  func.func @transform_5(%arg0: i32, %arg1: i32) -> (i32, i32) {
    %c0_i32 = arith.constant 0 : i32
    %c0_i32_0 = arith.constant 0 : i32
    return %arg0, %c0_i32 : i32, i32
  }
}

</mosaic_0001>

<llo_original>
// kernel: graph_conv.1
$region0: #{graph_conv.1}
  #allocation0 [shape = 'u32[]', space=smem, size = 0x4, offset = 0x4, fixed_abs, tag = 'smem constant byte address 0x4 - core index']
  #allocation1 [shape = 'u32[144,128]{1,0:T(1,128)}', space=vmem, size = 0x12000, scoped, tag = 'internal scratch']
  #allocation2 [shape = 'f32[32,128]{1,0:T(8,128)}', space=vmem, size = 0x4000, scoped, tag = 'scratch operand']
  %s0 = inlined_call_operand.vmem [shape: bf16[64,64], index: 0, kind: input, shape index: {}]
  %s1 = inlined_call_operand.vmem [shape: bf16[64,128], index: 1, kind: input, shape index: {}]
  %s2 = inlined_call_operand.vmem [shape: f32[128,128], index: 2, kind: input, shape index: {}]
  %s3 = inlined_call_operand.vmem [shape: f32[64,1], index: 3, kind: input, shape index: {}]
  %s4 = inlined_call_operand.vmem [shape: f32[1,128], index: 4, kind: input, shape index: {}]
  %s5 = inlined_call_operand.vmem [shape: f32[64,128], index: 5, kind: output, shape index: {}]
  %s6 = sld [smem:[#allocation0]]
  $region61: #{graph_conv.1} parent=0
    _
  %s8 = ssub.s32 1, %s6
  %s9 = scalar_select 0, %s8, %s6
  loop: start=0, step=1, limit=4
  $region2: #{graph_conv.1} parent=0 // loop_pre_header
    _
  $region3: #{graph_conv.1} parent=0 // loop_header
    %s11 = sphi 0, %s15
    %p12 = scmp.ge.s32.totalorder %s11, 4
    %s18 = sphi 0, %s30
    %s19 = sphi 0, %s26
    %s20 = sphi 0, %s18
    %s21 = sphi 0, %s19
    %s22 = sphi 0, %s20
    %s23 = sphi 0, %s21
    %s35 = sphi 0, %s37
    %s38 = sphi 0, %s35
    %s39 = sphi 0, %s38
    %s55 = sphi 0, %s39
    %s61 = sphi 0, %s63
    %s64 = sphi 0, %s61
    %s65 = sphi 0, %s64
    %s81 = sphi 0, %s65
    %s85 = sphi 0, %s85
    %s87 = sphi 0, %s85
    %s88 = sphi 0, %s87
    %s102 = sphi 0, %s88
    %s108 = sphi 0, %s110
    %s111 = sphi 0, %s108
    %s112 = sphi 0, %s111
    %s128 = sphi 0, %s112
    %s132 = sphi 0, %s132
    %s134 = sphi 0, %s132
    %s135 = sphi 0, %s134
    %s149 = sphi 0, %s135
    %s155 = sphi 0, %s157
    %s158 = sphi 0, %s155
    %s159 = sphi 0, %s158
    %s175 = sphi 0, %s159
  $region4: #{graph_conv.1} parent=0 // loop_header_branch
    %14 = sbr.rel (%p12) target = $region8
  $region5: #{graph_conv.1} parent=0 // loop_body
    %s16 = ssub.s32 %s11, 1
    %s17 = ssub.s32 %s11, 2
    %s24 = sadd.s32 1, %s19
    %p25 = scmp.ge.s32.totalorder %s24, 1
    %s26 = scalar_select %p25, 0, %s24
    %s27 = sadd.s32 1, %s18
    %s28 = scalar_select %p25, %s27, %s18
    %p29 = scmp.ge.s32.totalorder %s28, 2
    %s30 = scalar_select %p29, 0, %s28
    %s31 = ssub.s32 %s18, %s30
    %s32 = ssub.s32 %s19, %s26
    %s33 = sor.u32 %s31, %s32
    %p34 = scmp.eq.s32.totalorder %s33, 0
    %s36 = sadd.s32 %s35, 1
    %s37 = scalar_select %p34, %s35, %s36
    %p40 = pneg %p34
    %p41 = scmp.eq.s32.totalorder %s11, 1
    %p42 = por %p40, %p41
    %p43 = scmp.ne.s32.totalorder %s35, %s38
    %p44 = scmp.eq.s32.totalorder %s11, 0
    %p45 = por %p43, %p44
    %p46 = scmp.ne.s32.totalorder %s35, %s38
    %p47 = scmp.eq.s32.totalorder %s16, 1
    %p48 = por %p46, %p47
    %p49 = scmp.ne.s32.totalorder %s38, %s39
    %p50 = scmp.eq.s32.totalorder %s16, 0
    %p51 = por %p49, %p50
    %p52 = scmp.ne.s32.totalorder %s38, %s39
    %p53 = scmp.eq.s32.totalorder %s17, 1
    %p54 = por %p52, %p53
    %p56 = scmp.ne.s32.totalorder %s39, %s55
    %p57 = scmp.eq.s32.totalorder %s17, 0
    %p58 = por %p56, %p57
    %s59 = ssub.s32 %s19, %s26
    %p60 = scmp.eq.s32.totalorder %s59, 0
    %s62 = sadd.s32 %s61, 1
    %s63 = scalar_select %p60, %s61, %s62
    %p66 = pneg %p60
    %p67 = scmp.eq.s32.totalorder %s11, 1
    %p68 = por %p66, %p67
    %p69 = scmp.ne.s32.totalorder %s61, %s64
    %p70 = scmp.eq.s32.totalorder %s11, 0
    %p71 = por %p69, %p70
    %p72 = scmp.ne.s32.totalorder %s61, %s64
    %p73 = scmp.eq.s32.totalorder %s16, 1
    %p74 = por %p72, %p73
    %p75 = scmp.ne.s32.totalorder %s64, %s65
    %p76 = scmp.eq.s32.totalorder %s16, 0
    %p77 = por %p75, %p76
    %p78 = scmp.ne.s32.totalorder %s64, %s65
    %p79 = scmp.eq.s32.totalorder %s17, 1
    %p80 = por %p78, %p79
    %p82 = scmp.ne.s32.totalorder %s65, %s81
    %p83 = scmp.eq.s32.totalorder %s17, 0
    %p84 = por %p82, %p83
    %s86 = sadd.s32 %s85, 1
    %p89 = scmp.eq.s32.totalorder %s11, 1
    %p90 = scmp.ne.s32.totalorder %s85, %s87
    %p91 = scmp.eq.s32.totalorder %s11, 0
    %p92 = por %p90, %p91
    %p93 = scmp.ne.s32.totalorder %s85, %s87
    %p94 = scmp.eq.s32.totalorder %s16, 1
    %p95 = por %p93, %p94
    %p96 = scmp.ne.s32.totalorder %s87, %s88
    %p97 = scmp.eq.s32.totalorder %s16, 0
    %p98 = por %p96, %p97
    %p99 = scmp.ne.s32.totalorder %s87, %s88
    %p100 = scmp.eq.s32.totalorder %s17, 1
    %p101 = por %p99, %p100
    %p103 = scmp.ne.s32.totalorder %s88, %s102
    %p104 = scmp.eq.s32.totalorder %s17, 0
    %p105 = por %p103, %p104
    %s106 = ssub.s32 %s18, %s30
    %p107 = scmp.eq.s32.totalorder %s106, 0
    %s109 = sadd.s32 %s108, 1
    %s110 = scalar_select %p107, %s108, %s109
    %p113 = pneg %p107
    %p114 = scmp.eq.s32.totalorder %s11, 1
    %p115 = por %p113, %p114
    %p116 = scmp.ne.s32.totalorder %s108, %s111
    %p117 = scmp.eq.s32.totalorder %s11, 0
    %p118 = por %p116, %p117
    %p119 = scmp.ne.s32.totalorder %s108, %s111
    %p120 = scmp.eq.s32.totalorder %s16, 1
    %p121 = por %p119, %p120
    %p122 = scmp.ne.s32.totalorder %s111, %s112
    %p123 = scmp.eq.s32.totalorder %s16, 0
    %p124 = por %p122, %p123
    %p125 = scmp.ne.s32.totalorder %s111, %s112
    %p126 = scmp.eq.s32.totalorder %s17, 1
    %p127 = por %p125, %p126
    %p129 = scmp.ne.s32.totalorder %s112, %s128
    %p130 = scmp.eq.s32.totalorder %s17, 0
    %p131 = por %p129, %p130
    %s133 = sadd.s32 %s132, 1
    %p136 = scmp.eq.s32.totalorder %s11, 1
    %p137 = scmp.ne.s32.totalorder %s132, %s134
    %p138 = scmp.eq.s32.totalorder %s11, 0
    %p139 = por %p137, %p138
    %p140 = scmp.ne.s32.totalorder %s132, %s134
    %p141 = scmp.eq.s32.totalorder %s16, 1
    %p142 = por %p140, %p141
    %p143 = scmp.ne.s32.totalorder %s134, %s135
    %p144 = scmp.eq.s32.totalorder %s16, 0
    %p145 = por %p143, %p144
    %p146 = scmp.ne.s32.totalorder %s134, %s135
    %p147 = scmp.eq.s32.totalorder %s17, 1
    %p148 = por %p146, %p147
    %p150 = scmp.ne.s32.totalorder %s135, %s149
    %p151 = scmp.eq.s32.totalorder %s17, 0
    %p152 = por %p150, %p151
    %s153 = ssub.s32 %s18, %s30
    %p154 = scmp.eq.s32.totalorder %s153, 0
    %s156 = sadd.s32 %s155, 1
    %s157 = scalar_select %p154, %s155, %s156
    %p160 = pneg %p154
    %p161 = scmp.eq.s32.totalorder %s11, 1
    %p162 = por %p160, %p161
    %p163 = scmp.ne.s32.totalorder %s155, %s158
    %p164 = scmp.eq.s32.totalorder %s11, 0
    %p165 = por %p163, %p164
    %p166 = scmp.ne.s32.totalorder %s155, %s158
    %p167 = scmp.eq.s32.totalorder %s16, 1
    %p168 = por %p166, %p167
    %p169 = scmp.ne.s32.totalorder %s158, %s159
    %p170 = scmp.eq.s32.totalorder %s16, 0
    %p171 = por %p169, %p170
    %p172 = scmp.ne.s32.totalorder %s158, %s159
    %p173 = scmp.eq.s32.totalorder %s17, 1
    %p174 = por %p172, %p173
    %p176 = scmp.ne.s32.totalorder %s159, %s175
    %p177 = scmp.eq.s32.totalorder %s17, 0
    %p178 = por %p176, %p177
    %p179 = scmp.le.s32.totalorder 1, %s11
    %p180 = scmp.lt.s32.totalorder %s11, 3
    %p181 = pnand %p179, %p180
    %p182 = pneg %p181
    // Predicated region
    $region9: #{graph_conv.1} parent=5 // pred_check
      _
    $region10: #{graph_conv.1} parent=5 // pred_check_branch
      %184 = sbr.rel (%p181) target = $region12
    $region11: #{graph_conv.1} parent=5 // pred_region
      %s185 = ssub.s32 %s11, 1
      // Predicated region
      $region13: #{graph_conv.1} parent=11 // pred_check
        %p186 = pneg %p77
      $region14: #{graph_conv.1} parent=11 // pred_check_branch
        %188 = sbr.rel (%p186) target = $region16
      $region15: #{graph_conv.1} parent=11 // pred_region
        %s189 = smul.u32 8, %s21
        %p190 = scmp.lt.s32.totalorder %s189, 7
        %s191 = scalar_select %p190, %s189, 7
        %s192 = smul.addr %s191, 4
        %s193 = scalar_lea.vmem %s1, %s192
        %s194 = smul.u32 8, %s21
      $region16: #{graph_conv.1} parent=11 // pred_fallthru
        _
      // Predicated region
      $region17: #{graph_conv.1} parent=11 // pred_check
        %p195 = pneg %p98
      $region18: #{graph_conv.1} parent=11 // pred_check_branch
        %197 = sbr.rel (%p195) target = $region20
      $region19: #{graph_conv.1} parent=11 // pred_region
        _
      $region20: #{graph_conv.1} parent=11 // pred_fallthru
        _
      // Predicated region
      $region21: #{graph_conv.1} parent=11 // pred_check
        %p198 = pneg %p145
      $region22: #{graph_conv.1} parent=11 // pred_check_branch
        %200 = sbr.rel (%p198) target = $region24
      $region23: #{graph_conv.1} parent=11 // pred_region
        _
      $region24: #{graph_conv.1} parent=11 // pred_fallthru
        _
    $region12: #{graph_conv.1} parent=5 // pred_fallthru
      _
    %p201 = scmp.lt.s32.totalorder %s11, 2
    // Predicated region
    $region25: #{graph_conv.1} parent=5 // pred_check
      %p202 = pneg %p201
    $region26: #{graph_conv.1} parent=5 // pred_check_branch
      %204 = sbr.rel (%p202) target = $region28
    $region27: #{graph_conv.1} parent=5 // pred_region
      // Predicated region
      $region29: #{graph_conv.1} parent=27 // pred_check
        %p205 = pneg %p45
      $region30: #{graph_conv.1} parent=27 // pred_check_branch
        %207 = sbr.rel (%p205) target = $region32
      $region31: #{graph_conv.1} parent=27 // pred_region
        %s208 = smul.u32 4, %s18
        %p209 = scmp.lt.s32.totalorder %s208, 7
        %s210 = scalar_select %p209, %s208, 7
        %p211 = scmp.lt.s32.totalorder %s19, 0
        %s212 = scalar_select %p211, %s19, 0
        %s213 = sadd.s32 %s212, %s210
        %s214 = smul.addr %s213, 4
        %s215 = scalar_lea.vmem %s0, %s214
        %s216 = smul.u32 4, %s18
      $region32: #{graph_conv.1} parent=27 // pred_fallthru
        _
      // Predicated region
      $region33: #{graph_conv.1} parent=27 // pred_check
        %p217 = pneg %p118
      $region34: #{graph_conv.1} parent=27 // pred_check_branch
        %219 = sbr.rel (%p217) target = $region36
      $region35: #{graph_conv.1} parent=27 // pred_region
        %s220 = smul.u32 4, %s18
        %p221 = scmp.lt.s32.totalorder %s220, 7
        %s222 = scalar_select %p221, %s220, 7
        %s223 = smul.addr %s222, 8
        %s224 = scalar_lea.vmem %s3, %s223
        %s225 = smul.u32 4, %s18
      $region36: #{graph_conv.1} parent=27 // pred_fallthru
        _
    $region28: #{graph_conv.1} parent=5 // pred_fallthru
      _
    %p226 = scmp.le.s32.totalorder 1, %s11
    %p227 = scmp.lt.s32.totalorder %s11, 3
    %p228 = pnand %p226, %p227
    %p229 = pneg %p228
    // Predicated region
    $region37: #{graph_conv.1} parent=5 // pred_check
      _
    $region38: #{graph_conv.1} parent=5 // pred_check_branch
      %231 = sbr.rel (%p228) target = $region40
    $region39: #{graph_conv.1} parent=5 // pred_region
      %s232 = ssub.s32 %s11, 1
      %s233 = smul.u32 4, %s20
      %p234 = scmp.lt.s32.totalorder %s233, 7
      %s235 = scalar_select %p234, %s233, 7
      %p236 = scmp.lt.s32.totalorder %s21, 0
      %s237 = scalar_select %p236, %s21, 0
      %s238 = sadd.s32 %s237, %s235
      %s239 = smul.addr %s238, 4
      %s240 = scalar_lea.vmem %s0, %s239
      %p241 = pneg %p51
      %p242 = pneg %p48
      %s243 = smul.u32 8, %s21
      %p244 = scmp.lt.s32.totalorder %s243, 7
      %s245 = scalar_select %p244, %s243, 7
      %s246 = smul.addr %s245, 4
      %s247 = scalar_lea.vmem %s1, %s246
      %p248 = pneg %p77
      %p249 = pneg %p74
      %p250 = pneg %p98
      %p251 = pneg %p95
      %s252 = smul.u32 4, %s20
      %p253 = scmp.lt.s32.totalorder %s252, 7
      %s254 = scalar_select %p253, %s252, 7
      %s255 = smul.addr %s254, 8
      %s256 = scalar_lea.vmem %s3, %s255
      %p257 = pneg %p124
      %p258 = pneg %p121
      %p259 = pneg %p145
      %p260 = pneg %p142
      %p261 = pneg %p171
      %p262 = pneg %p168
      %s263 = smul.u32 4, %s20
      %p264 = scmp.lt.s32.totalorder %s263, 7
      %s265 = scalar_select %p264, %s263, 7
      %s266 = smul.addr %s265, 8
      %s267 = scalar_lea.vmem %s5, %s266
      %s268 = smul.u32 4, %s20
      %p269 = scmp.lt.s32.totalorder %s268, 7
      %s270 = scalar_select %p269, %s268, 7
      %p271 = scmp.lt.s32.totalorder %s21, 0
      %s272 = scalar_select %p271, %s21, 0
      %s273 = sadd.s32 %s272, %s270
      %s274 = smul.addr %s273, 4
      %s275 = scalar_lea.vmem %s0, %s274
      %s276 = smul.u32 4, %s20
      %s277 = smul.u32 8, %s21
      %p278 = scmp.lt.s32.totalorder %s277, 7
      %s279 = scalar_select %p278, %s277, 7
      %s280 = smul.addr %s279, 4
      %s281 = scalar_lea.vmem %s1, %s280
      %s282 = smul.u32 8, %s21
      %s283 = smul.u32 4, %s20
      %p284 = scmp.lt.s32.totalorder %s283, 7
      %s285 = scalar_select %p284, %s283, 7
      %s286 = smul.addr %s285, 8
      %s287 = scalar_lea.vmem %s3, %s286
      %s288 = smul.u32 4, %s20
      %s289 = smul.u32 4, %s20
      %p290 = scmp.lt.s32.totalorder %s289, 7
      %s291 = scalar_select %p290, %s289, 7
      %s292 = smul.addr %s291, 8
      %s293 = scalar_lea.vmem %s5, %s292
      %s294 = smul.u32 4, %s20
      %p296 = scmp.eq.s32.totalorder %s21, 0
      // Predicated region
      $region41: #{graph_conv.1} parent=39 // pred_check
        %p297 = pneg %p296
      $region42: #{graph_conv.1} parent=39 // pred_check_branch
        %299 = sbr.rel (%p297) target = $region44
      $region43: #{graph_conv.1} parent=39 // pred_region
        %300 = vst [vmem:[#allocation2] sm:$0xff] 0.0
        %301 = vst [vmem:[#allocation2 + $0x8] sm:$0xff] 0.0
        %302 = vst [vmem:[#allocation2 + $0x10] sm:$0xff] 0.0
        %303 = vst [vmem:[#allocation2 + $0x18] sm:$0xff] 0.0
      $region44: #{graph_conv.1} parent=39 // pred_fallthru
        _
      %v304 = vld [vmem:[#allocation2] sm:$0xff]
      %v305 = vld [vmem:[#allocation2 + $0x8] sm:$0xff]
      %v306 = vld [vmem:[#allocation2 + $0x10] sm:$0xff]
      %v307 = vld [vmem:[#allocation2 + $0x18] sm:$0xff]
      %v308 = vld [vmem:[%s275] sm:$0xf]
      %v309 = vld [vmem:[%s275 + $0x4] sm:$0xf]
      %v310 = vld [vmem:[%s275 + $0x8] sm:$0xf]
      %v311 = vld [vmem:[%s275 + $0xc] sm:$0xf]
      %v312 = vld [vmem:[%s281] sm:$0xf]
      %v313 = vld [vmem:[%s281 + $0x4] sm:$0xf]
      %v314 = vld [vmem:[%s281 + $0x8] sm:$0xf]
      %v315 = vld [vmem:[%s281 + $0xc] sm:$0xf]
      %v316 = vld [vmem:[%s281 + $0x10] sm:$0xf]
      %v317 = vld [vmem:[%s281 + $0x14] sm:$0xf]
      %v318 = vld [vmem:[%s281 + $0x18] sm:$0xf]
      %v319 = vld [vmem:[%s281 + $0x1c] sm:$0xf]
      %v324 = vunpack.c.l.b16 %v308
      %v325 = vunpack.c.l.b16 %v309
      %v326 = vunpack.c.l.b16 %v310
      %v327 = vunpack.c.l.b16 %v311
      %v328 = vpack.c.b16 %v325, %v324
      %v329 = vpack.c.b16 %v327, %v326
      %v338 = vunpack.c.l.b16 %v312
      %v339 = vunpack.c.l.b16 %v313
      %v340 = vunpack.c.l.b16 %v314
      %v341 = vunpack.c.l.b16 %v315
      %v342 = vunpack.c.l.b16 %v316
      %v343 = vunpack.c.l.b16 %v317
      %v344 = vunpack.c.l.b16 %v318
      %v345 = vunpack.c.l.b16 %v319
      %v346 = vpack.c.b16 %v339, %v338
      %v347 = vpack.c.b16 %v341, %v340
      %v348 = vpack.c.b16 %v343, %v342
      %v349 = vpack.c.b16 %v345, %v344
      %vm354 = vcmask 523264
      %v356 = vsel %vm354, %v328, 0
      %v359 = vsel %vm354, %v329, 0
      %361 = vmatprep.subr.bf16.mxu0 0
      %362 = vmatpush1.bf16.msra.mxu0 %v346
      %363 = vmatprep.subr.bf16.mxu0 0
      %364 = vmatpush1.bf16.msra.mxu0 %v347
      %365 = vmatprep.subr.bf16.mxu0 0
      %366 = vmatpush1.bf16.msra.mxu0 %v348
      %367 = vmatprep.subr.bf16.mxu0 0
      %368 = vmatpush1.bf16.msra.mxu0 %v349
      %369 = vmatprep.subr.bf16.mxu0 0
      %370 = vmatpush1.bf16.msra.mxu0 0
      %371 = vmatprep.subr.bf16.mxu0 0
      %372 = vmatpush1.bf16.msra.mxu0 0
      %373 = vmatprep.subr.bf16.mxu0 0
      %374 = vmatpush1.bf16.msra.mxu0 0
      %375 = vmatprep.subr.bf16.mxu0 0
      %376 = vmatpush1.bf16.msra.mxu0 0
      %377 = vmatprep.subr.bf16.mxu0 0
      %378 = vmatpush1.bf16.msra.mxu0 0
      %379 = vmatprep.subr.bf16.mxu0 0
      %380 = vmatpush1.bf16.msra.mxu0 0
      %381 = vmatprep.subr.bf16.mxu0 0
      %382 = vmatpush1.bf16.msra.mxu0 0
      %383 = vmatprep.subr.bf16.mxu0 0
      %384 = vmatpush1.bf16.msra.mxu0 0
      %385 = vmatprep.subr.bf16.mxu0 0
      %386 = vmatpush1.bf16.msra.mxu0 0
      %387 = vmatprep.subr.bf16.mxu0 0
      %388 = vmatpush1.bf16.msra.mxu0 0
      %389 = vmatprep.subr.bf16.mxu0 0
      %390 = vmatpush1.bf16.msra.mxu0 0
      %391 = vmatprep.subr.bf16.mxu0 0
      %392 = vmatpush1.bf16.msra.mxu0 0
      %393 = vmatprep.mubr.bf16.mxu0 0
      %394 = vmatmul.mubr.bf16.gmra.mrb[0].mxu0 %v356
      %v395 = vpop.f32.mrb[0].mxu0
      %v396 = vadd.f32 0.0, %v395
      %v397 = vpop.f32.mrb[0].mxu0
      %v398 = vpop.f32.mrb[0].mxu0
      %v399 = vadd.f32 0.0, %v398
      %v400 = vpop.f32.mrb[0].mxu0
      %401 = vmatprep.mubr.bf16.mxu0 0
      %402 = vmatmul.mubr.bf16.gmra.mrb[0].mxu0 %v359
      %v403 = vpop.f32.mrb[0].mxu0
      %v404 = vadd.f32 0.0, %v403
      %v405 = vpop.f32.mrb[0].mxu0
      %v406 = vpop.f32.mrb[0].mxu0
      %v407 = vadd.f32 0.0, %v406
      %v408 = vpop.f32.mrb[0].mxu0
      %409 = vdwg.mxu0
      %v410 = vadd.f32 %v304, %v396
      %v411 = vadd.f32 %v305, %v399
      %v412 = vadd.f32 %v306, %v404
      %v413 = vadd.f32 %v307, %v407
      %414 = vst [vmem:[#allocation2] sm:$0xff] %v410
      %415 = vst [vmem:[#allocation2 + $0x8] sm:$0xff] %v411
      %416 = vst [vmem:[#allocation2 + $0x10] sm:$0xff] %v412
      %417 = vst [vmem:[#allocation2 + $0x18] sm:$0xff] %v413
      // Predicated region
      $region45: #{graph_conv.1} parent=39 // pred_check
        %p418 = pneg %p296
      $region46: #{graph_conv.1} parent=39 // pred_check_branch
        %420 = sbr.rel (%p418) target = $region48
      $region47: #{graph_conv.1} parent=39 // pred_region
        %v421 = vld [vmem:[#allocation2] sm:$0xff]
        %v422 = vld [vmem:[#allocation2 + $0x8] sm:$0xff]
        %v423 = vld [vmem:[#allocation2 + $0x10] sm:$0xff]
        %v424 = vld [vmem:[#allocation2 + $0x18] sm:$0xff]
        %v425 = vld [vmem:[%s2] sm:$0xff]
        %v426 = vld [vmem:[%s2 + $0x8] sm:$0xff]
        %v427 = vld [vmem:[%s2 + $0x10] sm:$0xff]
        %v428 = vld [vmem:[%s2 + $0x18] sm:$0xff]
        %v429 = vld [vmem:[%s2 + $0x20] sm:$0xff]
        %v430 = vld [vmem:[%s2 + $0x28] sm:$0xff]
        %v431 = vld [vmem:[%s2 + $0x30] sm:$0xff]
        %v432 = vld [vmem:[%s2 + $0x38] sm:$0xff]
        %v433 = vld [vmem:[%s2 + $0x40] sm:$0xff]
        %v434 = vld [vmem:[%s2 + $0x48] sm:$0xff]
        %v435 = vld [vmem:[%s2 + $0x50] sm:$0xff]
        %v436 = vld [vmem:[%s2 + $0x58] sm:$0xff]
        %v437 = vld [vmem:[%s2 + $0x60] sm:$0xff]
        %v438 = vld [vmem:[%s2 + $0x68] sm:$0xff]
        %v439 = vld [vmem:[%s2 + $0x70] sm:$0xff]
        %v440 = vld [vmem:[%s2 + $0x78] sm:$0xff]
        %441 = vmatprep.subr.mxu0 0.0
        %442 = vmatpush1.msra.mxu0 %v425
        %443 = vmatprep.subr.mxu0 0.0
        %444 = vmatpush1.msra.mxu0 %v426
        %445 = vmatprep.subr.mxu0 0.0
        %446 = vmatpush1.msra.mxu0 %v427
        %447 = vmatprep.subr.mxu0 0.0
        %448 = vmatpush1.msra.mxu0 %v428
        %449 = vmatprep.subr.mxu0 0.0
        %450 = vmatpush1.msra.mxu0 %v429
        %451 = vmatprep.subr.mxu0 0.0
        %452 = vmatpush1.msra.mxu0 %v430
        %453 = vmatprep.subr.mxu0 0.0
        %454 = vmatpush1.msra.mxu0 %v431
        %455 = vmatprep.subr.mxu0 0.0
        %456 = vmatpush1.msra.mxu0 %v432
        %457 = vmatprep.subr.mxu0 0.0
        %458 = vmatpush1.msra.mxu0 %v433
        %459 = vmatprep.subr.mxu0 0.0
        %460 = vmatpush1.msra.mxu0 %v434
        %461 = vmatprep.subr.mxu0 0.0
        %462 = vmatpush1.msra.mxu0 %v435
        %463 = vmatprep.subr.mxu0 0.0
        %464 = vmatpush1.msra.mxu0 %v436
        %465 = vmatprep.subr.mxu0 0.0
        %466 = vmatpush1.msra.mxu0 %v437
        %467 = vmatprep.subr.mxu0 0.0
        %468 = vmatpush1.msra.mxu0 %v438
        %469 = vmatprep.subr.mxu0 0.0
        %470 = vmatpush1.msra.mxu0 %v439
        %471 = vmatprep.subr.mxu0 0.0
        %472 = vmatpush1.msra.mxu0 %v440
        %473 = vmatprep.subr.mxu0 0.0
        %474 = vmatpush1.msra.mxu0 0.0
        %475 = vmatprep.subr.mxu0 0.0
        %476 = vmatpush1.msra.mxu0 0.0
        %477 = vmatprep.subr.mxu0 0.0
        %478 = vmatpush1.msra.mxu0 0.0
        %479 = vmatprep.subr.mxu0 0.0
        %480 = vmatpush1.msra.mxu0 0.0
        %481 = vmatprep.subr.mxu0 0.0
        %482 = vmatpush1.msra.mxu0 0.0
        %483 = vmatprep.subr.mxu0 0.0
        %484 = vmatpush1.msra.mxu0 0.0
        %485 = vmatprep.subr.mxu0 0.0
        %486 = vmatpush1.msra.mxu0 0.0
        %487 = vmatprep.subr.mxu0 0.0
        %488 = vmatpush1.msra.mxu0 0.0
        %489 = vmatprep.subr.mxu0 0.0
        %490 = vmatpush1.msra.mxu0 0.0
        %491 = vmatprep.subr.mxu0 0.0
        %492 = vmatpush1.msra.mxu0 0.0
        %493 = vmatprep.subr.mxu0 0.0
        %494 = vmatpush1.msra.mxu0 0.0
        %495 = vmatprep.subr.mxu0 0.0
        %496 = vmatpush1.msra.mxu0 0.0
        %497 = vmatprep.subr.mxu0 0.0
        %498 = vmatpush1.msra.mxu0 0.0
        %499 = vmatprep.subr.mxu0 0.0
        %500 = vmatpush1.msra.mxu0 0.0
        %501 = vmatprep.subr.mxu0 0.0
        %502 = vmatpush1.msra.mxu0 0.0
        %503 = vmatprep.subr.mxu0 0.0
        %504 = vmatpush1.msra.mxu0 0.0
        %505 = vmatprep.mubr.f32.mxu0 0.0
        %506 = vmatmul.mubr.f32.gmra.mrb[0].mxu0 %v421
        %v507 = vpop.f32.mrb[0].mxu0
        %v508 = vadd.f32 0.0, %v507
        %v509 = vpop.f32.mrb[0].mxu0
        %510 = vmatprep.mubr.f32.mxu0 0.0
        %511 = vmatmul.mubr.f32.gmra.mrb[0].mxu0 %v422
        %v512 = vpop.f32.mrb[0].mxu0
        %v513 = vadd.f32 0.0, %v512
        %v514 = vpop.f32.mrb[0].mxu0
        %515 = vmatprep.mubr.f32.mxu0 0.0
        %516 = vmatmul.mubr.f32.gmra.mrb[0].mxu0 %v423
        %v517 = vpop.f32.mrb[0].mxu0
        %v518 = vadd.f32 0.0, %v517
        %v519 = vpop.f32.mrb[0].mxu0
        %520 = vmatprep.mubr.f32.mxu0 0.0
        %521 = vmatmul.mubr.f32.gmra.mrb[0].mxu0 %v424
        %v522 = vpop.f32.mrb[0].mxu0
        %v523 = vadd.f32 0.0, %v522
        %v524 = vpop.f32.mrb[0].mxu0
        %525 = vdwg.mxu0
        %v526 = vld [vmem:[%s287] sm:$0xff]
        %v527 = vld [vmem:[%s287 + $0x8] sm:$0xff]
        %v528 = vld [vmem:[%s287 + $0x10] sm:$0xff]
        %v529 = vld [vmem:[%s287 + $0x18] sm:$0xff]
        %531 = vset.pattern.permute.xlu0 0
        %532 = vperm.xlu0 %531, %v526
        %v533 = vpop.permute.xlu0 %532
        %536 = vset.pattern.permute.xlu0 0
        %537 = vperm.xlu0 %536, %v527
        %v538 = vpop.permute.xlu0 %537
        %541 = vset.pattern.permute.xlu0 0
        %542 = vperm.xlu0 %541, %v528
        %v543 = vpop.permute.xlu0 %542
        %546 = vset.pattern.permute.xlu0 0
        %547 = vperm.xlu0 %546, %v529
        %v548 = vpop.permute.xlu0 %547
        %v550 = vmul.f32 %v508, %v533
        %v551 = vmul.f32 %v513, %v538
        %v552 = vmul.f32 %v518, %v543
        %v553 = vmul.f32 %v523, %v548
        %v554 = vld [vmem:[%s4] sm:$0x1]
        %v556 = vlaneseq
        %v557 = vshrl.u32 %v556, 7
        %v558 = vsub.s32 0, %v557
        %v559 = vrot.slane %v554, %v558
        %v561 = vadd.f32 %v550, %v559
        %v562 = vadd.f32 %v551, %v559
        %v563 = vadd.f32 %v552, %v559
        %v564 = vadd.f32 %v553, %v559
        %565 = vst [vmem:[%s293] sm:$0xff] %v561
        %566 = vst [vmem:[%s293 + $0x8] sm:$0xff] %v562
        %567 = vst [vmem:[%s293 + $0x10] sm:$0xff] %v563
        %568 = vst [vmem:[%s293 + $0x18] sm:$0xff] %v564
      $region48: #{graph_conv.1} parent=39 // pred_fallthru
        _
      %s569 = smul.u32 4, %s20
      %p570 = scmp.lt.s32.totalorder %s569, 7
      %s571 = scalar_select %p570, %s569, 7
      %s572 = smul.addr %s571, 8
      %s573 = scalar_lea.vmem %s5, %s572
      // Predicated region
      $region49: #{graph_conv.1} parent=39 // pred_check
        %p574 = pneg %p168
      $region50: #{graph_conv.1} parent=39 // pred_check_branch
        %576 = sbr.rel (%p574) target = $region52
      $region51: #{graph_conv.1} parent=39 // pred_region
        %s577 = smul.u32 4, %s20
      $region52: #{graph_conv.1} parent=39 // pred_fallthru
        _
    $region40: #{graph_conv.1} parent=5 // pred_fallthru
      _
    %p578 = scmp.le.s32.totalorder 2, %s11
    // Predicated region
    $region53: #{graph_conv.1} parent=5 // pred_check
      %p579 = pneg %p578
    $region54: #{graph_conv.1} parent=5 // pred_check_branch
      %581 = sbr.rel (%p579) target = $region56
    $region55: #{graph_conv.1} parent=5 // pred_region
      %s582 = ssub.s32 %s11, 2
      // Predicated region
      $region57: #{graph_conv.1} parent=55 // pred_check
        %p583 = pneg %p174
      $region58: #{graph_conv.1} parent=55 // pred_check_branch
        %585 = sbr.rel (%p583) target = $region60
      $region59: #{graph_conv.1} parent=55 // pred_region
        %s586 = smul.u32 4, %s22
        %p587 = scmp.lt.s32.totalorder %s586, 7
        %s588 = scalar_select %p587, %s586, 7
        %s589 = smul.addr %s588, 8
        %s590 = scalar_lea.vmem %s5, %s589
      $region60: #{graph_conv.1} parent=55 // pred_fallthru
        _
    $region56: #{graph_conv.1} parent=5 // pred_fallthru
      _
  $region6: #{graph_conv.1} parent=0 // loop_footer
    %s15 = sadd.s32 1, %s11
  $region7: #{graph_conv.1} parent=0 // loop_footer_branch
    %10 = sbr.rel target = $region3
  $region8: #{graph_conv.1} parent=0 // loop_exit
    _

</llo_original>
